<compile_context>
chip_gen: v7x
topology: tpu7x:2x2x1
jax: 0.10.0
libtpu: 0.0.40
codegen_flags: <defaults>
</compile_context>

<pallas_src>
import functools

import jax
import jax.numpy as jnp
from jax.experimental import pallas as pl
from jax.experimental.pallas import tpu as pltpu


def _pair(v):
    if isinstance(v, (tuple, list)):
        assert len(v) == 2
        return int(v[0]), int(v[1])
    return int(v), int(v)


def _pad_up(n, m):
    return -(-n // m) * m


def _max_mag_pool_kernel(x_ref, o_ref, *, kh, kw):
    """x_ref: (2, kh, kw, tho, Wo, NC)   o_ref: (2, tho, Wo, NC)."""
    best_r = best_i = best_m = None
    # Row-major window order + strict '>' reproduces argmax first-max ties.
    for i in range(kh):
        for j in range(kw):
            xr = x_ref[0, i, j]                       # (tho, Wo, NC)
            xi = x_ref[1, i, j]
            xr32 = xr.astype(jnp.float32)
            xi32 = xi.astype(jnp.float32)
            m2 = xr32 * xr32 + xi32 * xi32            # squared magnitude
            if best_m is None:
                best_r, best_i, best_m = xr, xi, m2
            else:
                take = m2 > best_m
                best_r = jnp.where(take, xr, best_r)
                best_i = jnp.where(take, xi, best_i)
                best_m = jnp.where(take, m2, best_m)
    o_ref[0] = best_r
    o_ref[1] = best_i


def max_mag_pool_cmplx(x, kernel_size, stride=None, *,
                       tile_target_bytes=6 << 20, **pool_kwargs):
    """Forward of MaxMagPoolCmplx: x is (2, N, C, H, W)."""
    if pool_kwargs:
        # TODO(synk): padding / dilation / ceil_mode pool kwargs not implemented.
        raise NotImplementedError(f"unsupported pool kwargs: {sorted(pool_kwargs)}")

    kh, kw = _pair(kernel_size)
    sh, sw = _pair(stride) if stride is not None else (kh, kw)
    if (sh, sw) != (kh, kw):
        # TODO(synk): overlapping windows (stride != kernel_size) not implemented.
        raise NotImplementedError("only stride == kernel_size is supported")

    two, N, C, H, W = x.shape
    assert two == 2, "expected complex layout (2, N, C, H, W)"
    Ho, Wo = H // kh, W // kw
    assert Ho >= 1 and Wo >= 1
    NC = N * C
    itemsize = jnp.dtype(x.dtype).itemsize

    # Lane-dense, window-major view: (2, kh, kw, Ho, Wo, NC), channels on lanes.
    # TODO(synk): in an NHWC end-to-end model this transpose fuses away.
    xv = x.reshape(2, NC, H, W)[:, :, :Ho * kh, :Wo * kw]
    xv = xv.reshape(2, NC, Ho, kh, Wo, kw)
    xt = jnp.transpose(xv, (0, 3, 5, 2, 4, 1))        # (2, kh, kw, Ho, Wo, NC)

    # Tile over output-row stripes (cdiv grid, no divisor search).  The per-row
    # byte estimate uses padded (8, 128) minor dims so the VMEM budget is real.
    slab_pad = _pad_up(Wo, 8) * _pad_up(NC, 128)
    in_row = 2 * kh * kw * slab_pad * itemsize
    out_row = 2 * slab_pad * itemsize
    tho = max(1, min(Ho, tile_target_bytes // max(in_row, 1)))
    if Ho >= 2:                                        # keep >=2 grid steps (v7x: 2 TCs)
        tho = min(tho, pl.cdiv(Ho, 2))
    grid = (pl.cdiv(Ho, tho),)

    in_p = tho * in_row
    out_p = tho * out_row
    tmp_p = 6 * tho * slab_pad * 4                     # carried best_{r,i,m} + cur slabs
    vmem_bytes = min(max(2 * (in_p + out_p) + tmp_p + (4 << 20), 16 << 20), 48 << 20)

    cost = pl.CostEstimate(
        flops=8 * kh * kw * Ho * Wo * NC,
        transcendentals=0,
        bytes_accessed=(2 * NC * H * W + 2 * NC * Ho * Wo) * itemsize,
    )

    kernel = functools.partial(_max_mag_pool_kernel, kh=kh, kw=kw)
    out = pl.pallas_call(
        kernel,
        out_shape=jax.ShapeDtypeStruct((2, Ho, Wo, NC), x.dtype),
        grid=grid,
        in_specs=[pl.BlockSpec((2, kh, kw, tho, Wo, NC),
                               lambda r: (0, 0, 0, r, 0, 0))],
        out_specs=pl.BlockSpec((2, tho, Wo, NC), lambda r: (0, r, 0, 0)),
        compiler_params=pltpu.CompilerParams(
            dimension_semantics=("parallel",),
            vmem_limit_bytes=int(vmem_bytes)),
        cost_estimate=cost,
    )(xt)

    # Back to the module's (2, N, C, Ho, Wo) layout.
    return jnp.transpose(out, (0, 3, 1, 2)).reshape(2, N, C, Ho, Wo)


def _reference(x, kernel_size):
    """Pure-JAX mirror of pool_cmplx(..., operator='mag'), default stride."""
    kh, kw = _pair(kernel_size)
    two, N, C, H, W = x.shape
    Ho, Wo = H // kh, W // kw
    xv = x[:, :, :, :Ho * kh, :Wo * kw].reshape(2, N, C, Ho, kh, Wo, kw)
    wins = jnp.transpose(xv, (0, 1, 2, 3, 5, 4, 6)).reshape(2, N, C, Ho, Wo, kh * kw)
    m2 = jnp.sum(wins * wins, axis=0)                  # (N, C, Ho, Wo, kh*kw)
    idx = jnp.argmax(m2, axis=-1)                      # first-max, row-major window
    out = jnp.take_along_axis(wins, idx[None, ..., None], axis=-1)[..., 0]
    return out                                         # (2, N, C, Ho, Wo)


if __name__ == "__main__":
    key = jax.random.PRNGKey(0)
    k1, k2 = jax.random.split(key)

    # Case 1: (2, N=2, C=4, 16, 16), kernel 2.
    x1 = jax.random.normal(k1, (2, 2, 4, 16, 16), dtype=jnp.float32)
    out1 = jax.block_until_ready(max_mag_pool_cmplx(x1, kernel_size=2))
    ref1 = _reference(x1, 2)
    assert out1.shape == (2, 2, 4, 8, 8)
    assert jnp.allclose(out1, ref1, rtol=1e-6, atol=1e-6), "case-1 mismatch"

    # Case 2: non-square kernel + floor-mode spatial trimming + ragged grid.
    x2 = jax.random.normal(k2, (2, 2, 4, 10, 12), dtype=jnp.float32)
    out2 = jax.block_until_ready(max_mag_pool_cmplx(x2, kernel_size=(3, 2)))
    ref2 = _reference(x2, (3, 2))
    assert out2.shape == (2, 2, 4, 3, 6)
    assert jnp.allclose(out2, ref2, rtol=1e-6, atol=1e-6), "case-2 mismatch"

    print("KERNEL_OK")
</pallas_src>

<mosaic_0001>
module attributes {stable_mosaic.version = 11 : i64} {
  func.func @_max_mag_pool_kernel(%arg0: i32, %arg1: memref<2x2x2x4x8x8xf32, #tpu.memory_space<vmem>>, %arg2: memref<2x4x8x8xf32, #tpu.memory_space<vmem>>) attributes {dimension_semantics = [#tpu.dimension_semantics<parallel>], iteration_bounds = array<i64: 2>, scalar_prefetch = 0 : i64, scratch_operands = 0 : i64, tpu.core_type = #tpu.core_type<tc>, window_params = [{transform_indices = @transform_0, window_bounds = array<i64: 2, 2, 2, 4, 8, 8>}, {transform_indices = @transform_1, window_bounds = array<i64: 2, 4, 8, 8>}]} {
    %c0 = arith.constant 0 : index
    %c0_0 = arith.constant 0 : index
    %c0_1 = arith.constant 0 : index
    %c0_2 = arith.constant 0 : index
    %c0_3 = arith.constant 0 : index
    %c0_4 = arith.constant 0 : index
    %0 = vector.load %arg1[%c0, %c0_0, %c0_1, %c0_2, %c0_3, %c0_4] : memref<2x2x2x4x8x8xf32, #tpu.memory_space<vmem>>, vector<1x1x1x4x8x8xf32>
    %1 = vector.shape_cast %0 : vector<1x1x1x4x8x8xf32> to vector<4x8x8xf32>
    %c1 = arith.constant 1 : index
    %c0_5 = arith.constant 0 : index
    %c0_6 = arith.constant 0 : index
    %c0_7 = arith.constant 0 : index
    %c0_8 = arith.constant 0 : index
    %c0_9 = arith.constant 0 : index
    %2 = vector.load %arg1[%c1, %c0_5, %c0_6, %c0_7, %c0_8, %c0_9] : memref<2x2x2x4x8x8xf32, #tpu.memory_space<vmem>>, vector<1x1x1x4x8x8xf32>
    %3 = vector.shape_cast %2 : vector<1x1x1x4x8x8xf32> to vector<4x8x8xf32>
    %4 = arith.mulf %1, %1 : vector<4x8x8xf32>
    %5 = arith.mulf %3, %3 : vector<4x8x8xf32>
    %6 = arith.addf %4, %5 : vector<4x8x8xf32>
    %c0_10 = arith.constant 0 : index
    %c0_11 = arith.constant 0 : index
    %c1_12 = arith.constant 1 : index
    %c0_13 = arith.constant 0 : index
    %c0_14 = arith.constant 0 : index
    %c0_15 = arith.constant 0 : index
    %7 = vector.load %arg1[%c0_10, %c0_11, %c1_12, %c0_13, %c0_14, %c0_15] : memref<2x2x2x4x8x8xf32, #tpu.memory_space<vmem>>, vector<1x1x1x4x8x8xf32>
    %8 = vector.shape_cast %7 : vector<1x1x1x4x8x8xf32> to vector<4x8x8xf32>
    %c1_16 = arith.constant 1 : index
    %c0_17 = arith.constant 0 : index
    %c1_18 = arith.constant 1 : index
    %c0_19 = arith.constant 0 : index
    %c0_20 = arith.constant 0 : index
    %c0_21 = arith.constant 0 : index
    %9 = vector.load %arg1[%c1_16, %c0_17, %c1_18, %c0_19, %c0_20, %c0_21] : memref<2x2x2x4x8x8xf32, #tpu.memory_space<vmem>>, vector<1x1x1x4x8x8xf32>
    %10 = vector.shape_cast %9 : vector<1x1x1x4x8x8xf32> to vector<4x8x8xf32>
    %11 = arith.mulf %8, %8 : vector<4x8x8xf32>
    %12 = arith.mulf %10, %10 : vector<4x8x8xf32>
    %13 = arith.addf %11, %12 : vector<4x8x8xf32>
    %14 = arith.cmpf ogt, %13, %6 : vector<4x8x8xf32>
    %15 = arith.select %14, %8, %1 : vector<4x8x8xi1>, vector<4x8x8xf32>
    %16 = arith.select %14, %10, %3 : vector<4x8x8xi1>, vector<4x8x8xf32>
    %17 = arith.select %14, %13, %6 : vector<4x8x8xi1>, vector<4x8x8xf32>
    %c0_22 = arith.constant 0 : index
    %c1_23 = arith.constant 1 : index
    %c0_24 = arith.constant 0 : index
    %c0_25 = arith.constant 0 : index
    %c0_26 = arith.constant 0 : index
    %c0_27 = arith.constant 0 : index
    %18 = vector.load %arg1[%c0_22, %c1_23, %c0_24, %c0_25, %c0_26, %c0_27] : memref<2x2x2x4x8x8xf32, #tpu.memory_space<vmem>>, vector<1x1x1x4x8x8xf32>
    %19 = vector.shape_cast %18 : vector<1x1x1x4x8x8xf32> to vector<4x8x8xf32>
    %c1_28 = arith.constant 1 : index
    %c1_29 = arith.constant 1 : index
    %c0_30 = arith.constant 0 : index
    %c0_31 = arith.constant 0 : index
    %c0_32 = arith.constant 0 : index
    %c0_33 = arith.constant 0 : index
    %20 = vector.load %arg1[%c1_28, %c1_29, %c0_30, %c0_31, %c0_32, %c0_33] : memref<2x2x2x4x8x8xf32, #tpu.memory_space<vmem>>, vector<1x1x1x4x8x8xf32>
    %21 = vector.shape_cast %20 : vector<1x1x1x4x8x8xf32> to vector<4x8x8xf32>
    %22 = arith.mulf %19, %19 : vector<4x8x8xf32>
    %23 = arith.mulf %21, %21 : vector<4x8x8xf32>
    %24 = arith.addf %22, %23 : vector<4x8x8xf32>
    %25 = arith.cmpf ogt, %24, %17 : vector<4x8x8xf32>
    %26 = arith.select %25, %19, %15 : vector<4x8x8xi1>, vector<4x8x8xf32>
    %27 = arith.select %25, %21, %16 : vector<4x8x8xi1>, vector<4x8x8xf32>
    %28 = arith.select %25, %24, %17 : vector<4x8x8xi1>, vector<4x8x8xf32>
    %c0_34 = arith.constant 0 : index
    %c1_35 = arith.constant 1 : index
    %c1_36 = arith.constant 1 : index
    %c0_37 = arith.constant 0 : index
    %c0_38 = arith.constant 0 : index
    %c0_39 = arith.constant 0 : index
    %29 = vector.load %arg1[%c0_34, %c1_35, %c1_36, %c0_37, %c0_38, %c0_39] : memref<2x2x2x4x8x8xf32, #tpu.memory_space<vmem>>, vector<1x1x1x4x8x8xf32>
    %30 = vector.shape_cast %29 : vector<1x1x1x4x8x8xf32> to vector<4x8x8xf32>
    %c1_40 = arith.constant 1 : index
    %c1_41 = arith.constant 1 : index
    %c1_42 = arith.constant 1 : index
    %c0_43 = arith.constant 0 : index
    %c0_44 = arith.constant 0 : index
    %c0_45 = arith.constant 0 : index
    %31 = vector.load %arg1[%c1_40, %c1_41, %c1_42, %c0_43, %c0_44, %c0_45] : memref<2x2x2x4x8x8xf32, #tpu.memory_space<vmem>>, vector<1x1x1x4x8x8xf32>
    %32 = vector.shape_cast %31 : vector<1x1x1x4x8x8xf32> to vector<4x8x8xf32>
    %33 = arith.mulf %30, %30 : vector<4x8x8xf32>
    %34 = arith.mulf %32, %32 : vector<4x8x8xf32>
    %35 = arith.addf %33, %34 : vector<4x8x8xf32>
    %36 = arith.cmpf ogt, %35, %28 : vector<4x8x8xf32>
    %37 = arith.select %36, %30, %26 : vector<4x8x8xi1>, vector<4x8x8xf32>
    %38 = arith.select %36, %32, %27 : vector<4x8x8xi1>, vector<4x8x8xf32>
    %c0_46 = arith.constant 0 : index
    %c0_47 = arith.constant 0 : index
    %c0_48 = arith.constant 0 : index
    %c0_49 = arith.constant 0 : index
    %39 = vector.load %arg2[%c0_46, %c0_47, %c0_48, %c0_49] : memref<2x4x8x8xf32, #tpu.memory_space<vmem>>, vector<1x4x8x8xf32>
    %40 = vector.shape_cast %39 : vector<1x4x8x8xf32> to vector<4x8x8xf32>
    %41 = vector.shape_cast %37 : vector<4x8x8xf32> to vector<1x4x8x8xf32>
    tpu.vector_store %arg2[%c0_46, %c0_47, %c0_48, %c0_49], %41 {strides = array<i32>} : memref<2x4x8x8xf32, #tpu.memory_space<vmem>>, vector<1x4x8x8xf32>,
    %c1_50 = arith.constant 1 : index
    %c0_51 = arith.constant 0 : index
    %c0_52 = arith.constant 0 : index
    %c0_53 = arith.constant 0 : index
    %42 = vector.load %arg2[%c1_50, %c0_51, %c0_52, %c0_53] : memref<2x4x8x8xf32, #tpu.memory_space<vmem>>, vector<1x4x8x8xf32>
    %43 = vector.shape_cast %42 : vector<1x4x8x8xf32> to vector<4x8x8xf32>
    %44 = vector.shape_cast %38 : vector<4x8x8xf32> to vector<1x4x8x8xf32>
    tpu.vector_store %arg2[%c1_50, %c0_51, %c0_52, %c0_53], %44 {strides = array<i32>} : memref<2x4x8x8xf32, #tpu.memory_space<vmem>>, vector<1x4x8x8xf32>,
    return
  }
  func.func @transform_0(%arg0: i32) -> (i32, i32, i32, i32, i32, i32) {
    %c0_i32 = arith.constant 0 : i32
    %c0_i32_0 = arith.constant 0 : i32
    %c0_i32_1 = arith.constant 0 : i32
    %c0_i32_2 = arith.constant 0 : i32
    %c0_i32_3 = arith.constant 0 : i32
    %c0_i32_4 = arith.constant 0 : i32
    return %c0_i32, %c0_i32_0, %c0_i32_1, %arg0, %c0_i32_2, %c0_i32_3 : i32, i32, i32, i32, i32, i32
  }
  func.func @transform_1(%arg0: i32) -> (i32, i32, i32, i32) {
    %c0_i32 = arith.constant 0 : i32
    %c0_i32_0 = arith.constant 0 : i32
    %c0_i32_1 = arith.constant 0 : i32
    %c0_i32_2 = arith.constant 0 : i32
    return %c0_i32, %arg0, %c0_i32_0, %c0_i32_1 : i32, i32, i32, i32
  }
}

</mosaic_0001>

<llo_original>
// kernel: tpu_custom_call.1
$region0: #{tpu_custom_call.1}
  #allocation0 [shape = 'u32[]', space=smem, size = 0x4, offset = 0x4, fixed_abs, tag = 'smem constant byte address 0x4 - core index']
  #allocation1 [shape = 'u32[144,128]{1,0:T(1,128)}', space=vmem, size = 0x12000, scoped, tag = 'internal scratch']
  #allocation6 [shape = 's32[]', space=sflag, size = 0x4, offset = 0, fixed_abs, tag = 'sflag constant byte address 0x0 - dummy sync flag']
  #allocation8 [shape = 's32[]', space=sflag, size = 0x4, offset = 0, fixed_abs, tag = 'sflag constant byte address 0x0 - dummy sync flag']
  %s0 = inlined_call_operand.hbm [shape: f32[2,2,2,8,8,8], index: 0, kind: input, shape index: {}]
  %s1 = inlined_call_operand.hbm [shape: f32[2,8,8,8], index: 1, kind: output, shape index: {}]
  %s2 = sld [smem:[#allocation0]]
  $region41: #{tpu_custom_call.1} parent=0
    _
  %s4 = ssub.s32 1, %s2
  %s5 = scalar_select 0, %s4, %s2
  $region1: #{tpu_custom_call.1} parent=0
    #allocation2 [shape = 'u8[262144]{0}', space=vmem, size = 0x40000, scoped, tag = 'input window, operand 0']
    #allocation3 [shape = 's32[2]{0}', space=sflag, size = 0x8, scoped, tag = 'scoped memory for tpu_custom_call.1']
    #allocation4 [shape = 's32[2]{0}', space=sflag, size = 0x8, scoped, tag = 'scoped memory for tpu_custom_call.1']
    #allocation5 [shape = 'u8[65536]{0}', space=vmem, size = 0x10000, scoped, tag = 'output window, operand 0']
    %6 = vsyncpa [#allocation3], 0
    %s7 = scalar_lea.sflag [#allocation3], 1
    %8 = vsyncpa %s7, 0
    %9 = vsyncpa [#allocation4], 0
    %s10 = scalar_lea.sflag [#allocation4], 1
    %11 = vsyncpa %s10, 0
    loop: start=0, step=1, limit=4
    $region2: #{tpu_custom_call.1} parent=1 // loop_pre_header
      _
    $region3: #{tpu_custom_call.1} parent=1 // loop_header
      %s13 = sphi 0, %s17
      %p14 = scmp.ge.s32.totalorder %s13, 4
      %s23 = sphi 0, %s25
      %s26 = sphi 0, %s23
      %s27 = sphi 0, %s26
      %s43 = sphi 0, %s27
      %s49 = sphi 0, %s51
      %s52 = sphi 0, %s49
      %s53 = sphi 0, %s52
      %s69 = sphi 0, %s53
    $region4: #{tpu_custom_call.1} parent=1 // loop_header_branch
      %16 = sbr.rel (%p14) target = $region8
    $region5: #{tpu_custom_call.1} parent=1 // loop_body
      %s18 = ssub.s32 %s13, 1
      %s19 = ssub.s32 %s13, 2
      %s20 = sadd.s32 %s13, 1
      %s21 = ssub.s32 %s13, %s20
      %p22 = scmp.eq.s32.totalorder %s21, 0
      %s24 = sadd.s32 %s23, 1
      %s25 = scalar_select %p22, %s23, %s24
      %p28 = pneg %p22
      %p29 = scmp.eq.s32.totalorder %s13, 1
      %p30 = por %p28, %p29
      %p31 = scmp.ne.s32.totalorder %s23, %s26
      %p32 = scmp.eq.s32.totalorder %s13, 0
      %p33 = por %p31, %p32
      %p34 = scmp.ne.s32.totalorder %s23, %s26
      %p35 = scmp.eq.s32.totalorder %s18, 1
      %p36 = por %p34, %p35
      %p37 = scmp.ne.s32.totalorder %s26, %s27
      %p38 = scmp.eq.s32.totalorder %s18, 0
      %p39 = por %p37, %p38
      %p40 = scmp.ne.s32.totalorder %s26, %s27
      %p41 = scmp.eq.s32.totalorder %s19, 1
      %p42 = por %p40, %p41
      %p44 = scmp.ne.s32.totalorder %s27, %s43
      %p45 = scmp.eq.s32.totalorder %s19, 0
      %p46 = por %p44, %p45
      %s47 = ssub.s32 %s13, %s20
      %p48 = scmp.eq.s32.totalorder %s47, 0
      %s50 = sadd.s32 %s49, 1
      %s51 = scalar_select %p48, %s49, %s50
      %p54 = pneg %p48
      %p55 = scmp.eq.s32.totalorder %s13, 1
      %p56 = por %p54, %p55
      %p57 = scmp.ne.s32.totalorder %s49, %s52
      %p58 = scmp.eq.s32.totalorder %s13, 0
      %p59 = por %p57, %p58
      %p60 = scmp.ne.s32.totalorder %s49, %s52
      %p61 = scmp.eq.s32.totalorder %s18, 1
      %p62 = por %p60, %p61
      %p63 = scmp.ne.s32.totalorder %s52, %s53
      %p64 = scmp.eq.s32.totalorder %s18, 0
      %p65 = por %p63, %p64
      %p66 = scmp.ne.s32.totalorder %s52, %s53
      %p67 = scmp.eq.s32.totalorder %s19, 1
      %p68 = por %p66, %p67
      %p70 = scmp.ne.s32.totalorder %s53, %s69
      %p71 = scmp.eq.s32.totalorder %s19, 0
      %p72 = por %p70, %p71
      %p73 = scmp.le.s32.totalorder 1, %s13
      %p74 = scmp.lt.s32.totalorder %s13, 3
      %p75 = pnand %p73, %p74
      %p76 = pneg %p75
      // Predicated region
      $region9: #{tpu_custom_call.1} parent=5 // pred_check
        _
      $region10: #{tpu_custom_call.1} parent=5 // pred_check_branch
        %78 = sbr.rel (%p75) target = $region12
      $region11: #{tpu_custom_call.1} parent=5 // pred_region
        %s79 = ssub.s32 %s13, 1
      $region12: #{tpu_custom_call.1} parent=5 // pred_fallthru
        _
      %p80 = scmp.lt.s32.totalorder %s13, 2
      // Predicated region
      $region13: #{tpu_custom_call.1} parent=5 // pred_check
        %p81 = pneg %p80
      $region14: #{tpu_custom_call.1} parent=5 // pred_check_branch
        %83 = sbr.rel (%p81) target = $region16
      $region15: #{tpu_custom_call.1} parent=5 // pred_region
        // Predicated region
        $region17: #{tpu_custom_call.1} parent=15 // pred_check
          %p84 = pneg %p33
        $region18: #{tpu_custom_call.1} parent=15 // pred_check_branch
          %86 = sbr.rel (%p84) target = $region20
        $region19: #{tpu_custom_call.1} parent=15 // pred_region
          #allocation7 [shape = 'u32[6]{0}', space=smem, size = 0x18, scoped, tag = 'DMA stride descriptor']
          %s87 = sand.u32 %s23, 1
          %s88 = scalar_lea.sflag [#allocation3], %s87
          %s89 = sand.u32 %s23, 1
          %s90 = smul.addr %s89, 256
          %s91 = scalar_lea.vmem [#allocation2], %s90
          %s92 = smul.u32 4, %s13
          %s94 = ssub.s32 4096, 4096
          %95 = vsyncadd %s88, %s94
          %s96 = smul.addr %s92, 128
          %s97 = scalar_lea.hbm %s0, %s96
          %s99 = sshll.u32 1, 14
          %s100 = sxor.u32 4294967295, %s99
          %s102 = sld [smem:[#allocation0]]
          %s103 = sadd.s32 2, %s102
          %s105 = sshll.u32 7, 26
          %s106 = sxor.u32 4294967295, %s105
          %s107 = sand.u32 0, %s106
          %s108 = sshll.u32 %s103, 26
          %s109 = sor.u32 %s107, %s108
          %s110 = sshll.u32 %s91, 4
          %s111 = int_to_ptr.vmem [resolvable:$true] %s110
          %117 = sst [smem:[#allocation7]] 1024
          %s118 = scalar_lea.smem [#allocation7], 1
          %119 = sst [smem:[%s118]] 512
          %s120 = scalar_lea.smem [#allocation7], 2
          %121 = sst [smem:[%s120]] 4
          %s122 = scalar_lea.smem [#allocation7], 3
          %123 = sst [smem:[%s122]] 128
          %s124 = scalar_lea.smem [#allocation7], 4
          %125 = sst [smem:[%s124]] 128
          %s126 = scalar_lea.smem [#allocation7], 5
          %127 = sst [smem:[%s126]] 8
          %129 = dma.general %s97, 4096, %s111, %s88, [#allocation6], [#allocation7], %s109, 0
        $region20: #{tpu_custom_call.1} parent=15 // pred_fallthru
          _
      $region16: #{tpu_custom_call.1} parent=5 // pred_fallthru
        _
      %p130 = scmp.le.s32.totalorder 1, %s13
      %p131 = scmp.lt.s32.totalorder %s13, 3
      %p132 = pnand %p130, %p131
      %p133 = pneg %p132
      // Predicated region
      $region21: #{tpu_custom_call.1} parent=5 // pred_check
        _
      $region22: #{tpu_custom_call.1} parent=5 // pred_check_branch
        %135 = sbr.rel (%p132) target = $region24
      $region23: #{tpu_custom_call.1} parent=5 // pred_region
        %s136 = ssub.s32 %s13, 1
        %s137 = sand.u32 %s26, 1
        %s138 = scalar_lea.sflag [#allocation3], %s137
        %s139 = sand.u32 %s26, 1
        %s140 = smul.addr %s139, 256
        %s141 = scalar_lea.vmem [#allocation2], %s140
        // Predicated region
        $region25: #{tpu_custom_call.1} parent=23 // pred_check
          %p142 = pneg %p39
        $region26: #{tpu_custom_call.1} parent=23 // pred_check_branch
          %144 = sbr.rel (%p142) target = $region28
        $region27: #{tpu_custom_call.1} parent=23 // pred_region
          %145 = dma.done %s138, 4096
        $region28: #{tpu_custom_call.1} parent=23 // pred_fallthru
          _
        %s146 = sand.u32 %s26, 1
        %s147 = scalar_lea.sflag [#allocation3], %s146
        %s148 = sand.u32 %s26, 1
        %s149 = smul.addr %s148, 256
        %s150 = scalar_lea.vmem [#allocation2], %s149
        %p151 = pneg %p39
        %p152 = pneg %p36
        %p153 = pneg %p65
        %p154 = pneg %p62
        %s155 = sand.u32 %s52, 1
        %s156 = scalar_lea.sflag [#allocation4], %s155
        %s157 = sand.u32 %s52, 1
        %s158 = smul.addr %s157, 64
        %s159 = scalar_lea.vmem [#allocation5], %s158
        %s160 = smul.u32 4, %s18
        %s161 = smul.u32 4, %s18
        %v162 = vld [vmem:[%s141] sm:$0xff]
        %v163 = vld [vmem:[%s141 + $0x8] sm:$0xff]
        %v164 = vld [vmem:[%s141 + $0x10] sm:$0xff]
        %v165 = vld [vmem:[%s141 + $0x18] sm:$0xff]
        %s166 = scalar_lea.vmem %s141, 128 [#allocation2]
        %v167 = vld [vmem:[%s166] sm:$0xff]
        %v168 = vld [vmem:[%s166 + $0x8] sm:$0xff]
        %v169 = vld [vmem:[%s166 + $0x10] sm:$0xff]
        %v170 = vld [vmem:[%s166 + $0x18] sm:$0xff]
        %v171 = vmul.f32 %v162, %v162
        %v172 = vmul.f32 %v163, %v163
        %v173 = vmul.f32 %v164, %v164
        %v174 = vmul.f32 %v165, %v165
        %v175 = vmul.f32 %v167, %v167
        %v176 = vmul.f32 %v168, %v168
        %v177 = vmul.f32 %v169, %v169
        %v178 = vmul.f32 %v170, %v170
        %v179 = vadd.f32 %v171, %v175
        %v180 = vadd.f32 %v172, %v176
        %v181 = vadd.f32 %v173, %v177
        %v182 = vadd.f32 %v174, %v178
        %s183 = scalar_lea.vmem %s141, 32 [#allocation2]
        %v184 = vld [vmem:[%s183] sm:$0xff]
        %v185 = vld [vmem:[%s183 + $0x8] sm:$0xff]
        %v186 = vld [vmem:[%s183 + $0x10] sm:$0xff]
        %v187 = vld [vmem:[%s183 + $0x18] sm:$0xff]
        %s188 = scalar_lea.vmem %s141, 160 [#allocation2]
        %v189 = vld [vmem:[%s188] sm:$0xff]
        %v190 = vld [vmem:[%s188 + $0x8] sm:$0xff]
        %v191 = vld [vmem:[%s188 + $0x10] sm:$0xff]
        %v192 = vld [vmem:[%s188 + $0x18] sm:$0xff]
        %v193 = vmul.f32 %v184, %v184
        %v194 = vmul.f32 %v185, %v185
        %v195 = vmul.f32 %v186, %v186
        %v196 = vmul.f32 %v187, %v187
        %v197 = vmul.f32 %v189, %v189
        %v198 = vmul.f32 %v190, %v190
        %v199 = vmul.f32 %v191, %v191
        %v200 = vmul.f32 %v192, %v192
        %v201 = vadd.f32 %v193, %v197
        %v202 = vadd.f32 %v194, %v198
        %v203 = vadd.f32 %v195, %v199
        %v204 = vadd.f32 %v196, %v200
        %vm205 = vcmp.gt.f32.partialorder %v201, %v179
        %vm206 = vcmp.gt.f32.partialorder %v202, %v180
        %vm207 = vcmp.gt.f32.partialorder %v203, %v181
        %vm208 = vcmp.gt.f32.partialorder %v204, %v182
        %v209 = vsel %vm205, %v184, %v162
        %v210 = vsel %vm206, %v185, %v163
        %v211 = vsel %vm207, %v186, %v164
        %v212 = vsel %vm208, %v187, %v165
        %v213 = vsel %vm205, %v189, %v167
        %v214 = vsel %vm206, %v190, %v168
        %v215 = vsel %vm207, %v191, %v169
        %v216 = vsel %vm208, %v192, %v170
        %v217 = vsel %vm205, %v201, %v179
        %v218 = vsel %vm206, %v202, %v180
        %v219 = vsel %vm207, %v203, %v181
        %v220 = vsel %vm208, %v204, %v182
        %s221 = scalar_lea.vmem %s141, 64 [#allocation2]
        %v222 = vld [vmem:[%s221] sm:$0xff]
        %v223 = vld [vmem:[%s221 + $0x8] sm:$0xff]
        %v224 = vld [vmem:[%s221 + $0x10] sm:$0xff]
        %v225 = vld [vmem:[%s221 + $0x18] sm:$0xff]
        %s226 = scalar_lea.vmem %s141, 192 [#allocation2]
        %v227 = vld [vmem:[%s226] sm:$0xff]
        %v228 = vld [vmem:[%s226 + $0x8] sm:$0xff]
        %v229 = vld [vmem:[%s226 + $0x10] sm:$0xff]
        %v230 = vld [vmem:[%s226 + $0x18] sm:$0xff]
        %v231 = vmul.f32 %v222, %v222
        %v232 = vmul.f32 %v223, %v223
        %v233 = vmul.f32 %v224, %v224
        %v234 = vmul.f32 %v225, %v225
        %v235 = vmul.f32 %v227, %v227
        %v236 = vmul.f32 %v228, %v228
        %v237 = vmul.f32 %v229, %v229
        %v238 = vmul.f32 %v230, %v230
        %v239 = vadd.f32 %v231, %v235
        %v240 = vadd.f32 %v232, %v236
        %v241 = vadd.f32 %v233, %v237
        %v242 = vadd.f32 %v234, %v238
        %vm243 = vcmp.gt.f32.partialorder %v239, %v217
        %vm244 = vcmp.gt.f32.partialorder %v240, %v218
        %vm245 = vcmp.gt.f32.partialorder %v241, %v219
        %vm246 = vcmp.gt.f32.partialorder %v242, %v220
        %v247 = vsel %vm243, %v222, %v209
        %v248 = vsel %vm244, %v223, %v210
        %v249 = vsel %vm245, %v224, %v211
        %v250 = vsel %vm246, %v225, %v212
        %v251 = vsel %vm243, %v227, %v213
        %v252 = vsel %vm244, %v228, %v214
        %v253 = vsel %vm245, %v229, %v215
        %v254 = vsel %vm246, %v230, %v216
        %v255 = vsel %vm243, %v239, %v217
        %v256 = vsel %vm244, %v240, %v218
        %v257 = vsel %vm245, %v241, %v219
        %v258 = vsel %vm246, %v242, %v220
        %s259 = scalar_lea.vmem %s141, 96 [#allocation2]
        %v260 = vld [vmem:[%s259] sm:$0xff]
        %v261 = vld [vmem:[%s259 + $0x8] sm:$0xff]
        %v262 = vld [vmem:[%s259 + $0x10] sm:$0xff]
        %v263 = vld [vmem:[%s259 + $0x18] sm:$0xff]
        %s264 = scalar_lea.vmem %s141, 224 [#allocation2]
        %v265 = vld [vmem:[%s264] sm:$0xff]
        %v266 = vld [vmem:[%s264 + $0x8] sm:$0xff]
        %v267 = vld [vmem:[%s264 + $0x10] sm:$0xff]
        %v268 = vld [vmem:[%s264 + $0x18] sm:$0xff]
        %v269 = vmul.f32 %v260, %v260
        %v270 = vmul.f32 %v261, %v261
        %v271 = vmul.f32 %v262, %v262
        %v272 = vmul.f32 %v263, %v263
        %v273 = vmul.f32 %v265, %v265
        %v274 = vmul.f32 %v266, %v266
        %v275 = vmul.f32 %v267, %v267
        %v276 = vmul.f32 %v268, %v268
        %v277 = vadd.f32 %v269, %v273
        %v278 = vadd.f32 %v270, %v274
        %v279 = vadd.f32 %v271, %v275
        %v280 = vadd.f32 %v272, %v276
        %vm281 = vcmp.gt.f32.partialorder %v277, %v255
        %vm282 = vcmp.gt.f32.partialorder %v278, %v256
        %vm283 = vcmp.gt.f32.partialorder %v279, %v257
        %vm284 = vcmp.gt.f32.partialorder %v280, %v258
        %v285 = vsel %vm281, %v260, %v247
        %v286 = vsel %vm282, %v261, %v248
        %v287 = vsel %vm283, %v262, %v249
        %v288 = vsel %vm284, %v263, %v250
        %v289 = vsel %vm281, %v265, %v251
        %v290 = vsel %vm282, %v266, %v252
        %v291 = vsel %vm283, %v267, %v253
        %v292 = vsel %vm284, %v268, %v254
        %vm293 = vcmask 64512
        %294 = vst.msk [vmem:[%s159] sm:$0xff] %vm293, %v285
        %295 = vst.msk [vmem:[%s159 + $0x8] sm:$0xff] %vm293, %v286
        %296 = vst.msk [vmem:[%s159 + $0x10] sm:$0xff] %vm293, %v287
        %297 = vst.msk [vmem:[%s159 + $0x18] sm:$0xff] %vm293, %v288
        %s298 = scalar_lea.vmem %s159, 32 [#allocation5]
        %299 = vst.msk [vmem:[%s298] sm:$0xff] %vm293, %v289
        %300 = vst.msk [vmem:[%s298 + $0x8] sm:$0xff] %vm293, %v290
        %301 = vst.msk [vmem:[%s298 + $0x10] sm:$0xff] %vm293, %v291
        %302 = vst.msk [vmem:[%s298 + $0x18] sm:$0xff] %vm293, %v292
        %s303 = sand.u32 %s52, 1
        %s304 = scalar_lea.sflag [#allocation4], %s303
        %s305 = sand.u32 %s52, 1
        %s306 = smul.addr %s305, 64
        %s307 = scalar_lea.vmem [#allocation5], %s306
        // Predicated region
        $region29: #{tpu_custom_call.1} parent=23 // pred_check
          %p308 = pneg %p62
        $region30: #{tpu_custom_call.1} parent=23 // pred_check_branch
          %310 = sbr.rel (%p308) target = $region32
        $region31: #{tpu_custom_call.1} parent=23 // pred_region
          #allocation9 [shape = 'u32[6]{0}', space=smem, size = 0x18, scoped, tag = 'DMA stride descriptor']
          %s311 = smul.u32 4, %s18
          %s313 = ssub.s32 1024, 1024
          %314 = vsyncadd %s304, %s313
          %s315 = smul.addr %s311, 128
          %s316 = scalar_lea.hbm %s1, %s315
          %s318 = sshll.u32 1, 14
          %s319 = sxor.u32 4294967295, %s318
          %s322 = sshll.u32 7, 18
          %s323 = sxor.u32 4294967295, %s322
          %s324 = sand.u32 0, %s323
          %s326 = sor.u32 %s324, 0
          %s328 = sshll.u32 3, 24
          %s329 = sxor.u32 4294967295, %s328
          %s330 = sand.u32 %s326, %s329
          %s332 = sor.u32 %s330, 0
          %s333 = sshll.u32 %s307, 4
          %s334 = int_to_ptr.vmem [resolvable:$true] %s333
          %340 = sst [smem:[#allocation9]] 512
          %s341 = scalar_lea.smem [#allocation9], 1
          %342 = sst [smem:[%s341]] 1024
          %s343 = scalar_lea.smem [#allocation9], 2
          %344 = sst [smem:[%s343]] 4
          %s345 = scalar_lea.smem [#allocation9], 3
          %346 = sst [smem:[%s345]] 128
          %s347 = scalar_lea.smem [#allocation9], 4
          %348 = sst [smem:[%s347]] 128
          %s349 = scalar_lea.smem [#allocation9], 5
          %350 = sst [smem:[%s349]] 8
          %352 = dma.general %s334, 1024, %s316, %s304, [#allocation8], [#allocation9], %s332, 0
        $region32: #{tpu_custom_call.1} parent=23 // pred_fallthru
          _
      $region24: #{tpu_custom_call.1} parent=5 // pred_fallthru
        _
      %p353 = scmp.le.s32.totalorder 2, %s13
      // Predicated region
      $region33: #{tpu_custom_call.1} parent=5 // pred_check
        %p354 = pneg %p353
      $region34: #{tpu_custom_call.1} parent=5 // pred_check_branch
        %356 = sbr.rel (%p354) target = $region36
      $region35: #{tpu_custom_call.1} parent=5 // pred_region
        %s357 = ssub.s32 %s13, 2
        // Predicated region
        $region37: #{tpu_custom_call.1} parent=35 // pred_check
          %p358 = pneg %p68
        $region38: #{tpu_custom_call.1} parent=35 // pred_check_branch
          %360 = sbr.rel (%p358) target = $region40
        $region39: #{tpu_custom_call.1} parent=35 // pred_region
          %s361 = sand.u32 %s53, 1
          %s362 = scalar_lea.sflag [#allocation4], %s361
          %s363 = sand.u32 %s53, 1
          %s364 = smul.addr %s363, 64
          %s365 = scalar_lea.vmem [#allocation5], %s364
          %366 = dma.done %s362, 1024
        $region40: #{tpu_custom_call.1} parent=35 // pred_fallthru
          _
      $region36: #{tpu_custom_call.1} parent=5 // pred_fallthru
        _
    $region6: #{tpu_custom_call.1} parent=1 // loop_footer
      %s17 = sadd.s32 1, %s13
    $region7: #{tpu_custom_call.1} parent=1 // loop_footer_branch
      %12 = sbr.rel target = $region3
    $region8: #{tpu_custom_call.1} parent=1 // loop_exit
      _
    %367 = vsyncpa [#allocation3], 1
    %s368 = scalar_lea.sflag [#allocation3], 1
    %369 = vsyncpa %s368, 1
    %370 = vsyncpa [#allocation4], 1
    %s371 = scalar_lea.sflag [#allocation4], 1
    %372 = vsyncpa %s371, 1

</llo_original>
